<compile_context>
chip_gen: v7x
topology: tpu7x:2x2x1
jax: 0.10.0
libtpu: 0.0.40
codegen_flags: <defaults>
</compile_context>

<pallas_src>
import functools

import jax
import jax.numpy as jnp
from jax.experimental import pallas as pl
from jax.experimental.pallas import tpu as pltpu


# ----------------------------------------------------------------------------
# Pallas kernel: one batch element per grid step.
# ----------------------------------------------------------------------------
def _guided_filter_kernel(x_ref, y_ref, bh_ref, bw_ref, invn_ref,
                          out_ref, meany_ref, *, eps_adj):
    x = x_ref[0].astype(jnp.float32)        # (C, Hp, Wp)
    y = y_ref[0].astype(jnp.float32)        # (C, Hp, Wp)
    bh = bh_ref[...]                        # (Hp, Hp) band matrix
    bw = bw_ref[...]                        # (Wp, Wp) band matrix
    inv_n = invn_ref[...]                   # (Hp, Wp); zero in padded region

    c, hp, _ = x.shape

    def bsum_many(planes):
        # H-direction: shared MXU weight bh applied per plane.
        t = [jnp.dot(bh, p, preferred_element_type=jnp.float32) for p in planes]
        # W-direction: stack along rows -> ONE (k*Hp, Wp) @ (Wp, Wp) matmul.
        s = jnp.dot(jnp.concatenate(t, axis=0), bw,
                    preferred_element_type=jnp.float32)
        return [s[i * hp:(i + 1) * hp] for i in range(len(planes))]

    # Channel sums of the UNSCALED inputs (0.001 scaling folded into eps_adj).
    s_y = jnp.sum(y, axis=0)
    s_x = jnp.sum(x, axis=0)
    s_xy = jnp.sum(x * y, axis=0)
    s_xx = jnp.sum(x * x, axis=0)

    b_y, b_x, b_xy, b_xx = bsum_many([s_y, s_x, s_xy, s_xx])

    mean_y = b_y * inv_n
    mean_x = b_x * inv_n
    cov_xy = b_xy * inv_n - mean_x * mean_y
    var_x = b_xx * inv_n - mean_x * mean_x

    # Identical to cov_s/(var_s + eps) of the 0.001-scaled formulation.
    A = cov_xy / (var_x + eps_adj)
    b = mean_y - A * mean_x

    b_A, b_b = bsum_many([A, b])
    mean_A = b_A * inv_n
    mean_b = b_b * inv_n

    # (mean_A * 0.001*x_mid + 0.001*mean_b) / 0.001  ==  mean_A*x_mid + mean_b
    out_ref[0, 0] = mean_A * x[c // 2] + mean_b
    # boxfilter(y) of the unscaled y (first return value of the module).
    meany_ref[0, 0] = b_y


# ----------------------------------------------------------------------------
# Wrapper
# ----------------------------------------------------------------------------
def guided_filter(x, y, r, eps=1e-8):
    """x, y: (N, C, H, W) float32.  r: int or [rx, ry] (only r[1] is used for
    both axes, matching the PyTorch BoxFilter.forward)."""
    if isinstance(r, (list, tuple)):
        rad = int(r[1])
    else:
        rad = int(r)

    n, c, h, w = x.shape
    assert y.shape == x.shape, "kernel assumes x and y share the same shape"

    # Pad spatial dims for lane/sublane density; crop outputs afterwards.
    hp = ((h + 7) // 8) * 8
    wp = ((w + 127) // 128) * 128

    # Clamped-window pixel counts N = boxfilter(ones) = C * rh ⊗ cw,
    # computed once on the ORIGINAL geometry; reciprocal, zero-padded.
    ih = jnp.arange(h)
    rh = (jnp.minimum(ih + rad, h - 1) - jnp.maximum(ih - rad, 0) + 1)
    iw = jnp.arange(w)
    cw = (jnp.minimum(iw + rad, w - 1) - jnp.maximum(iw - rad, 0) + 1)
    n_img = (c * rh[:, None] * cw[None, :]).astype(jnp.float32)
    inv_n = jnp.pad(1.0 / n_img, ((0, hp - h), (0, wp - w)))

    # Banded 0/1 matrices on the PADDED geometry (pad pixels are zero in the
    # data planes and in A/b, so the clamped box SUM is preserved exactly).
    jh = jnp.arange(hp)
    bh = (jnp.abs(jh[:, None] - jh[None, :]) <= rad).astype(jnp.float32)
    jw = jnp.arange(wp)
    bw = (jnp.abs(jw[:, None] - jw[None, :]) <= rad).astype(jnp.float32)

    xp = jnp.pad(x, ((0, 0), (0, 0), (0, hp - h), (0, wp - w)))
    yp = jnp.pad(y, ((0, 0), (0, 0), (0, hp - h), (0, wp - w)))

    kernel = functools.partial(_guided_filter_kernel,
                               eps_adj=float(eps) * 1.0e6)

    out_shapes = (
        jax.ShapeDtypeStruct((n, 1, hp, wp), jnp.float32),
        jax.ShapeDtypeStruct((n, 1, hp, wp), jnp.float32),
    )

    out, meany = pl.pallas_call(
        kernel,
        out_shape=out_shapes,
        grid_spec=pltpu.PrefetchScalarGridSpec(
            num_scalar_prefetch=0,
            grid=(n,),
            in_specs=[
                pl.BlockSpec((1, c, hp, wp), lambda i: (i, 0, 0, 0)),
                pl.BlockSpec((1, c, hp, wp), lambda i: (i, 0, 0, 0)),
                pl.BlockSpec((hp, hp), lambda i: (0, 0)),
                pl.BlockSpec((wp, wp), lambda i: (0, 0)),
                pl.BlockSpec((hp, wp), lambda i: (0, 0)),
            ],
            out_specs=[
                pl.BlockSpec((1, 1, hp, wp), lambda i: (i, 0, 0, 0)),
                pl.BlockSpec((1, 1, hp, wp), lambda i: (i, 0, 0, 0)),
            ],
        ),
        compiler_params=pltpu.CompilerParams(
            dimension_semantics=("parallel",),
            vmem_limit_bytes=48 * 1024 * 1024,
        ),
    )(xp, yp, bh, bw, inv_n)

    return out[:, :, :h, :w], meany[:, :, :h, :w]


# ----------------------------------------------------------------------------
# Pure-JAX reference (mirrors the PyTorch cumsum/diff implementation exactly)
# ----------------------------------------------------------------------------
def _ref_boxfilter(x, r):
    s = jnp.sum(x, axis=1, keepdims=True)
    c = jnp.cumsum(s, axis=2)
    left = c[:, :, r:2 * r + 1]
    middle = c[:, :, 2 * r + 1:] - c[:, :, :-2 * r - 1]
    right = c[:, :, -1:] - c[:, :, -2 * r - 1:-r - 1]
    dx = jnp.concatenate([left, middle, right], axis=2)
    c2 = jnp.cumsum(dx, axis=3)
    left = c2[:, :, :, r:2 * r + 1]
    middle = c2[:, :, :, 2 * r + 1:] - c2[:, :, :, :-2 * r - 1]
    right = c2[:, :, :, -1:] - c2[:, :, :, -2 * r - 1:-r - 1]
    return jnp.concatenate([left, middle, right], axis=3)


def _ref_guided_filter(x, y, r, eps=1e-8):
    rad = r[1] if isinstance(r, (list, tuple)) else r
    bf = lambda z: _ref_boxfilter(z, rad)
    mean_y_tmp = bf(y)
    x, y = 0.001 * x, 0.001 * y
    c_x = x.shape[1]
    N = bf(jnp.ones_like(x))
    mean_x = bf(x) / N
    mean_y = bf(y) / N
    cov_xy = bf(x * y) / N - mean_x * mean_y
    var_x = bf(x * x) / N - mean_x * mean_x
    A = cov_xy / (var_x + eps)
    b = mean_y - A * mean_x
    mean_A = bf(A) / N
    mean_b = bf(b) / N
    return (mean_A * x[:, c_x // 2:c_x // 2 + 1] + mean_b) / 0.001, mean_y_tmp


# ----------------------------------------------------------------------------
if __name__ == "__main__":
    key = jax.random.PRNGKey(0)
    kx, ky = jax.random.split(key)

    N, C, H, W = 2, 4, 16, 16
    r = [2, 2]
    eps = 1e-8

    x = jax.random.normal(kx, (N, C, H, W), dtype=jnp.float32)
    y = jax.random.normal(ky, (N, C, H, W), dtype=jnp.float32)

    out, mean_y_tmp = guided_filter(x, y, r, eps)
    jax.block_until_ready((out, mean_y_tmp))

    ref_out, ref_mean_y = _ref_guided_filter(x, y, r, eps)
    assert out.shape == ref_out.shape and mean_y_tmp.shape == ref_mean_y.shape
    assert jnp.allclose(out, ref_out, rtol=1e-4, atol=1e-4), "output mismatch"
    assert jnp.allclose(mean_y_tmp, ref_mean_y, rtol=1e-4, atol=1e-4), \
        "mean_y_tmp mismatch"

    print("KERNEL_OK")
</pallas_src>

<mosaic_0001>
module attributes {stable_mosaic.version = 11 : i64} {
  func.func @_guided_filter_kernel(%arg0: i32, %arg1: memref<1x4x16x128xf32, #tpu.memory_space<vmem>>, %arg2: memref<1x4x16x128xf32, #tpu.memory_space<vmem>>, %arg3: memref<16x16xf32, #tpu.memory_space<vmem>>, %arg4: memref<128x128xf32, #tpu.memory_space<vmem>>, %arg5: memref<16x128xf32, #tpu.memory_space<vmem>>, %arg6: memref<1x1x16x128xf32, #tpu.memory_space<vmem>>, %arg7: memref<1x1x16x128xf32, #tpu.memory_space<vmem>>) attributes {dimension_semantics = [#tpu.dimension_semantics<parallel>], iteration_bounds = array<i64: 2>, scalar_prefetch = 0 : i64, scratch_operands = 0 : i64, tpu.core_type = #tpu.core_type<tc>, window_params = [{transform_indices = @transform_0, window_bounds = array<i64: 1, 4, 16, 128>}, {transform_indices = @transform_1, window_bounds = array<i64: 1, 4, 16, 128>}, {pipeline_mode = #tpu.pipeline_mode<synchronous>, transform_indices = @transform_2, window_bounds = array<i64: 16, 16>}, {pipeline_mode = #tpu.pipeline_mode<synchronous>, transform_indices = @transform_3, window_bounds = array<i64: 128, 128>}, {pipeline_mode = #tpu.pipeline_mode<synchronous>, transform_indices = @transform_4, window_bounds = array<i64: 16, 128>}, {transform_indices = @transform_5, window_bounds = array<i64: 1, 1, 16, 128>}, {transform_indices = @transform_6, window_bounds = array<i64: 1, 1, 16, 128>}]} {
    %c0 = arith.constant 0 : index
    %c0_0 = arith.constant 0 : index
    %c0_1 = arith.constant 0 : index
    %c0_2 = arith.constant 0 : index
    %0 = vector.load %arg1[%c0, %c0_0, %c0_1, %c0_2] : memref<1x4x16x128xf32, #tpu.memory_space<vmem>>, vector<1x4x16x128xf32>
    %1 = vector.shape_cast %0 : vector<1x4x16x128xf32> to vector<4x16x128xf32>
    %c0_3 = arith.constant 0 : index
    %c0_4 = arith.constant 0 : index
    %c0_5 = arith.constant 0 : index
    %c0_6 = arith.constant 0 : index
    %2 = vector.load %arg2[%c0_3, %c0_4, %c0_5, %c0_6] : memref<1x4x16x128xf32, #tpu.memory_space<vmem>>, vector<1x4x16x128xf32>
    %3 = vector.shape_cast %2 : vector<1x4x16x128xf32> to vector<4x16x128xf32>
    %c0_7 = arith.constant 0 : index
    %c0_8 = arith.constant 0 : index
    %4 = vector.load %arg3[%c0_7, %c0_8] : memref<16x16xf32, #tpu.memory_space<vmem>>, vector<16x16xf32>
    %c0_9 = arith.constant 0 : index
    %c0_10 = arith.constant 0 : index
    %5 = vector.load %arg4[%c0_9, %c0_10] : memref<128x128xf32, #tpu.memory_space<vmem>>, vector<128x128xf32>
    %c0_11 = arith.constant 0 : index
    %c0_12 = arith.constant 0 : index
    %6 = vector.load %arg5[%c0_11, %c0_12] : memref<16x128xf32, #tpu.memory_space<vmem>>, vector<16x128xf32>
    %cst = arith.constant dense<0.000000e+00> : vector<16x128xf32>
    %7 = vector.multi_reduction <add>, %3, %cst [0] : vector<4x16x128xf32> to vector<16x128xf32>
    %cst_13 = arith.constant dense<0.000000e+00> : vector<16x128xf32>
    %8 = vector.multi_reduction <add>, %1, %cst_13 [0] : vector<4x16x128xf32> to vector<16x128xf32>
    %9 = arith.mulf %1, %3 : vector<4x16x128xf32>
    %cst_14 = arith.constant dense<0.000000e+00> : vector<16x128xf32>
    %10 = vector.multi_reduction <add>, %9, %cst_14 [0] : vector<4x16x128xf32> to vector<16x128xf32>
    %11 = arith.mulf %1, %1 : vector<4x16x128xf32>
    %cst_15 = arith.constant dense<0.000000e+00> : vector<16x128xf32>
    %12 = vector.multi_reduction <add>, %11, %cst_15 [0] : vector<4x16x128xf32> to vector<16x128xf32>
    %cst_16 = arith.constant dense<0.000000e+00> : vector<16x128xf32>
    %13 = tpu.matmul %4, %7, %cst_16 {dimension_numbers = #tpu.dot_dimension_numbers<[1], [0], [0], [1], [0, 0, 1, 1], [], []>} : vector<16x16xf32>, vector<16x128xf32>, vector<16x128xf32> -> vector<16x128xf32>
    %cst_17 = arith.constant dense<0.000000e+00> : vector<16x128xf32>
    %14 = tpu.matmul %4, %8, %cst_17 {dimension_numbers = #tpu.dot_dimension_numbers<[1], [0], [0], [1], [0, 0, 1, 1], [], []>} : vector<16x16xf32>, vector<16x128xf32>, vector<16x128xf32> -> vector<16x128xf32>
    %cst_18 = arith.constant dense<0.000000e+00> : vector<16x128xf32>
    %15 = tpu.matmul %4, %10, %cst_18 {dimension_numbers = #tpu.dot_dimension_numbers<[1], [0], [0], [1], [0, 0, 1, 1], [], []>} : vector<16x16xf32>, vector<16x128xf32>, vector<16x128xf32> -> vector<16x128xf32>
    %cst_19 = arith.constant dense<0.000000e+00> : vector<16x128xf32>
    %16 = tpu.matmul %4, %12, %cst_19 {dimension_numbers = #tpu.dot_dimension_numbers<[1], [0], [0], [1], [0, 0, 1, 1], [], []>} : vector<16x16xf32>, vector<16x128xf32>, vector<16x128xf32> -> vector<16x128xf32>
    %17 = tpu.concatenate %13, %14, %15, %16 in 0 : vector<16x128xf32>, vector<16x128xf32>, vector<16x128xf32>, vector<16x128xf32> -> vector<64x128xf32>
    %cst_20 = arith.constant dense<0.000000e+00> : vector<64x128xf32>
    %18 = tpu.matmul %17, %5, %cst_20 {dimension_numbers = #tpu.dot_dimension_numbers<[1], [0], [0], [1], [0, 0, 1, 1], [], []>} : vector<64x128xf32>, vector<128x128xf32>, vector<64x128xf32> -> vector<64x128xf32>
    %19 = vector.extract_strided_slice %18 {offsets = [0, 0], sizes = [16, 128], strides = [1, 1]} : vector<64x128xf32> to vector<16x128xf32>
    %20 = vector.extract_strided_slice %18 {offsets = [16, 0], sizes = [16, 128], strides = [1, 1]} : vector<64x128xf32> to vector<16x128xf32>
    %21 = vector.extract_strided_slice %18 {offsets = [32, 0], sizes = [16, 128], strides = [1, 1]} : vector<64x128xf32> to vector<16x128xf32>
    %22 = vector.extract_strided_slice %18 {offsets = [48, 0], sizes = [16, 128], strides = [1, 1]} : vector<64x128xf32> to vector<16x128xf32>
    %23 = arith.mulf %19, %6 : vector<16x128xf32>
    %24 = arith.mulf %20, %6 : vector<16x128xf32>
    %25 = arith.mulf %21, %6 : vector<16x128xf32>
    %26 = arith.mulf %24, %23 : vector<16x128xf32>
    %27 = arith.subf %25, %26 : vector<16x128xf32>
    %28 = arith.mulf %22, %6 : vector<16x128xf32>
    %29 = arith.mulf %24, %24 : vector<16x128xf32>
    %30 = arith.subf %28, %29 : vector<16x128xf32>
    %cst_21 = arith.constant 0.00999999977 : f32
    %31 = vector.broadcast %cst_21 : f32 to vector<16x128xf32>
    %32 = arith.addf %30, %31 : vector<16x128xf32>
    %33 = arith.divf %27, %32 : vector<16x128xf32>
    %34 = arith.mulf %33, %24 : vector<16x128xf32>
    %35 = arith.subf %23, %34 : vector<16x128xf32>
    %cst_22 = arith.constant dense<0.000000e+00> : vector<16x128xf32>
    %36 = tpu.matmul %4, %33, %cst_22 {dimension_numbers = #tpu.dot_dimension_numbers<[1], [0], [0], [1], [0, 0, 1, 1], [], []>} : vector<16x16xf32>, vector<16x128xf32>, vector<16x128xf32> -> vector<16x128xf32>
    %cst_23 = arith.constant dense<0.000000e+00> : vector<16x128xf32>
    %37 = tpu.matmul %4, %35, %cst_23 {dimension_numbers = #tpu.dot_dimension_numbers<[1], [0], [0], [1], [0, 0, 1, 1], [], []>} : vector<16x16xf32>, vector<16x128xf32>, vector<16x128xf32> -> vector<16x128xf32>
    %38 = tpu.concatenate %36, %37 in 0 : vector<16x128xf32>, vector<16x128xf32> -> vector<32x128xf32>
    %cst_24 = arith.constant dense<0.000000e+00> : vector<32x128xf32>
    %39 = tpu.matmul %38, %5, %cst_24 {dimension_numbers = #tpu.dot_dimension_numbers<[1], [0], [0], [1], [0, 0, 1, 1], [], []>} : vector<32x128xf32>, vector<128x128xf32>, vector<32x128xf32> -> vector<32x128xf32>
    %40 = vector.extract_strided_slice %39 {offsets = [0, 0], sizes = [16, 128], strides = [1, 1]} : vector<32x128xf32> to vector<16x128xf32>
    %41 = vector.extract_strided_slice %39 {offsets = [16, 0], sizes = [16, 128], strides = [1, 1]} : vector<32x128xf32> to vector<16x128xf32>
    %42 = arith.mulf %40, %6 : vector<16x128xf32>
    %43 = arith.mulf %41, %6 : vector<16x128xf32>
    %44 = vector.extract_strided_slice %1 {offsets = [2, 0, 0], sizes = [1, 16, 128], strides = [1, 1, 1]} : vector<4x16x128xf32> to vector<1x16x128xf32>
    %45 = vector.shape_cast %44 : vector<1x16x128xf32> to vector<16x128xf32>
    %46 = arith.mulf %42, %45 : vector<16x128xf32>
    %47 = arith.addf %46, %43 : vector<16x128xf32>
    %c0_25 = arith.constant 0 : index
    %c0_26 = arith.constant 0 : index
    %c0_27 = arith.constant 0 : index
    %c0_28 = arith.constant 0 : index
    %48 = vector.load %arg6[%c0_25, %c0_26, %c0_27, %c0_28] : memref<1x1x16x128xf32, #tpu.memory_space<vmem>>, vector<1x1x16x128xf32>
    %49 = vector.shape_cast %48 : vector<1x1x16x128xf32> to vector<16x128xf32>
    %50 = vector.shape_cast %47 : vector<16x128xf32> to vector<1x1x16x128xf32>
    tpu.vector_store %arg6[%c0_25, %c0_26, %c0_27, %c0_28], %50 {strides = array<i32>} : memref<1x1x16x128xf32, #tpu.memory_space<vmem>>, vector<1x1x16x128xf32>,
    %c0_29 = arith.constant 0 : index
    %c0_30 = arith.constant 0 : index
    %c0_31 = arith.constant 0 : index
    %c0_32 = arith.constant 0 : index
    %51 = vector.load %arg7[%c0_29, %c0_30, %c0_31, %c0_32] : memref<1x1x16x128xf32, #tpu.memory_space<vmem>>, vector<1x1x16x128xf32>
    %52 = vector.shape_cast %51 : vector<1x1x16x128xf32> to vector<16x128xf32>
    %53 = vector.shape_cast %19 : vector<16x128xf32> to vector<1x1x16x128xf32>
    tpu.vector_store %arg7[%c0_29, %c0_30, %c0_31, %c0_32], %53 {strides = array<i32>} : memref<1x1x16x128xf32, #tpu.memory_space<vmem>>, vector<1x1x16x128xf32>,
    return
  }
  func.func @transform_0(%arg0: i32) -> (i32, i32, i32, i32) {
    %c0_i32 = arith.constant 0 : i32
    %c0_i32_0 = arith.constant 0 : i32
    %c0_i32_1 = arith.constant 0 : i32
    %c0_i32_2 = arith.constant 0 : i32
    return %arg0, %c0_i32, %c0_i32_0, %c0_i32_1 : i32, i32, i32, i32
  }
  func.func @transform_1(%arg0: i32) -> (i32, i32, i32, i32) {
    %c0_i32 = arith.constant 0 : i32
    %c0_i32_0 = arith.constant 0 : i32
    %c0_i32_1 = arith.constant 0 : i32
    %c0_i32_2 = arith.constant 0 : i32
    return %arg0, %c0_i32, %c0_i32_0, %c0_i32_1 : i32, i32, i32, i32
  }
  func.func @transform_2(%arg0: i32) -> (i32, i32) {
    %c0_i32 = arith.constant 0 : i32
    %c0_i32_0 = arith.constant 0 : i32
    %c0_i32_1 = arith.constant 0 : i32
    return %c0_i32, %c0_i32_0 : i32, i32
  }
  func.func @transform_3(%arg0: i32) -> (i32, i32) {
    %c0_i32 = arith.constant 0 : i32
    %c0_i32_0 = arith.constant 0 : i32
    %c0_i32_1 = arith.constant 0 : i32
    return %c0_i32, %c0_i32_0 : i32, i32
  }
  func.func @transform_4(%arg0: i32) -> (i32, i32) {
    %c0_i32 = arith.constant 0 : i32
    %c0_i32_0 = arith.constant 0 : i32
    %c0_i32_1 = arith.constant 0 : i32
    return %c0_i32, %c0_i32_0 : i32, i32
  }
  func.func @transform_5(%arg0: i32) -> (i32, i32, i32, i32) {
    %c0_i32 = arith.constant 0 : i32
    %c0_i32_0 = arith.constant 0 : i32
    %c0_i32_1 = arith.constant 0 : i32
    %c0_i32_2 = arith.constant 0 : i32
    return %arg0, %c0_i32, %c0_i32_0, %c0_i32_1 : i32, i32, i32, i32
  }
  func.func @transform_6(%arg0: i32) -> (i32, i32, i32, i32) {
    %c0_i32 = arith.constant 0 : i32
    %c0_i32_0 = arith.constant 0 : i32
    %c0_i32_1 = arith.constant 0 : i32
    %c0_i32_2 = arith.constant 0 : i32
    return %arg0, %c0_i32, %c0_i32_0, %c0_i32_1 : i32, i32, i32, i32
  }
}

</mosaic_0001>

<llo_original>
// kernel: tpu_custom_call.1
$region0: #{tpu_custom_call.1}
  #allocation0 [shape = 'u32[]', space=smem, size = 0x4, offset = 0x4, fixed_abs, tag = 'smem constant byte address 0x4 - core index']
  #allocation1 [shape = 'u32[144,128]{1,0:T(1,128)}', space=vmem, size = 0x12000, scoped, tag = 'internal scratch']
  %s0 = inlined_call_operand.hbm [shape: f32[2,4,16,128], index: 0, kind: input, shape index: {}]
  %s1 = inlined_call_operand.hbm [shape: f32[2,4,16,128], index: 1, kind: input, shape index: {}]
  %s2 = inlined_call_operand.hbm [shape: f32[16,16], index: 2, kind: input, shape index: {}]
  %s3 = inlined_call_operand.hbm [shape: f32[128,128], index: 3, kind: input, shape index: {}]
  %s4 = inlined_call_operand.hbm [shape: f32[16,128], index: 4, kind: input, shape index: {}]
  %s5 = inlined_call_operand.hbm [shape: f32[2,1,16,128], index: 5, kind: output, shape index: {0}]
  %s6 = inlined_call_operand.hbm [shape: f32[2,1,16,128], index: 6, kind: output, shape index: {1}]
  %7 = xla_tuple %s5, %s6
  %s8 = sld [smem:[#allocation0]]
  $region81: #{tpu_custom_call.1} parent=0
    _
  %s10 = ssub.s32 1, %s8
  %s11 = scalar_select 0, %s10, %s8
  $region1: #{tpu_custom_call.1} parent=0
    #allocation2 [shape = 'u8[65536]{0}', space=vmem, size = 0x10000, scoped, tag = 'input window, operand 0']
    #allocation3 [shape = 's32[2]{0}', space=sflag, size = 0x8, scoped, tag = 'scoped memory for tpu_custom_call.1']
    #allocation4 [shape = 's32[2]{0}', space=sflag, size = 0x8, scoped, tag = 'scoped memory for tpu_custom_call.1']
    #allocation5 [shape = 'u8[65536]{0}', space=vmem, size = 0x10000, scoped, tag = 'input window, operand 1']
    #allocation6 [shape = 's32[2]{0}', space=sflag, size = 0x8, scoped, tag = 'scoped memory for tpu_custom_call.1']
    #allocation7 [shape = 'u8[8192]{0}', space=vmem, size = 0x2000, scoped, tag = 'input window, operand 2, single buffered']
    #allocation8 [shape = 'u8[65536]{0}', space=vmem, size = 0x10000, scoped, tag = 'input window, operand 3, single buffered']
    #allocation9 [shape = 's32[1]{0}', space=sflag, size = 0x4, scoped, tag = 'scoped memory for tpu_custom_call.1']
    #allocation10 [shape = 'u8[8192]{0}', space=vmem, size = 0x2000, scoped, tag = 'input window, operand 4, single buffered']
    #allocation11 [shape = 'u8[16384]{0}', space=vmem, size = 0x4000, scoped, tag = 'output window, operand 0']
    #allocation12 [shape = 'u8[16384]{0}', space=vmem, size = 0x4000, scoped, tag = 'output window, operand 1']
    #allocation13 [shape = 's32[2]{0}', space=sflag, size = 0x8, scoped, tag = 'scoped memory for tpu_custom_call.1']
    %12 = vsyncpa [#allocation3], 0
    %s13 = scalar_lea.sflag [#allocation3], 1
    %14 = vsyncpa %s13, 0
    %15 = vsyncpa [#allocation6], 0
    %s16 = scalar_lea.sflag [#allocation6], 1
    %17 = vsyncpa %s16, 0
    %18 = vsyncpa [#allocation9], 0
    %19 = vsyncpa [#allocation4], 0
    %s20 = scalar_lea.sflag [#allocation4], 1
    %21 = vsyncpa %s20, 0
    %22 = vsyncpa [#allocation13], 0
    %s23 = scalar_lea.sflag [#allocation13], 1
    %24 = vsyncpa %s23, 0
    loop: start=0, step=1, limit=4
    $region2: #{tpu_custom_call.1} parent=1 // loop_pre_header
      _
    $region3: #{tpu_custom_call.1} parent=1 // loop_header
      %s26 = sphi 0, %s30
      %p27 = scmp.ge.s32.totalorder %s26, 4
      %s36 = sphi 0, %s38
      %s39 = sphi 0, %s36
      %s40 = sphi 0, %s39
      %s56 = sphi 0, %s40
      %s62 = sphi 0, %s64
      %s65 = sphi 0, %s62
      %s66 = sphi 0, %s65
      %s82 = sphi 0, %s66
      %s86 = sphi 0, %s86
      %s88 = sphi 0, %s86
      %s89 = sphi 0, %s88
      %s103 = sphi 0, %s89
      %s107 = sphi 0, %s107
      %s109 = sphi 0, %s107
      %s110 = sphi 0, %s109
      %s124 = sphi 0, %s110
      %s128 = sphi 0, %s128
      %s130 = sphi 0, %s128
      %s131 = sphi 0, %s130
      %s145 = sphi 0, %s131
      %s151 = sphi 0, %s153
      %s154 = sphi 0, %s151
      %s155 = sphi 0, %s154
      %s171 = sphi 0, %s155
      %s177 = sphi 0, %s179
      %s180 = sphi 0, %s177
      %s181 = sphi 0, %s180
      %s197 = sphi 0, %s181
    $region4: #{tpu_custom_call.1} parent=1 // loop_header_branch
      %29 = sbr.rel (%p27) target = $region8
    $region5: #{tpu_custom_call.1} parent=1 // loop_body
      %s31 = ssub.s32 %s26, 1
      %s32 = ssub.s32 %s26, 2
      %s33 = sadd.s32 %s26, 1
      %s34 = ssub.s32 %s26, %s33
      %p35 = scmp.eq.s32.totalorder %s34, 0
      %s37 = sadd.s32 %s36, 1
      %s38 = scalar_select %p35, %s36, %s37
      %p41 = pneg %p35
      %p42 = scmp.eq.s32.totalorder %s26, 1
      %p43 = por %p41, %p42
      %p44 = scmp.ne.s32.totalorder %s36, %s39
      %p45 = scmp.eq.s32.totalorder %s26, 0
      %p46 = por %p44, %p45
      %p47 = scmp.ne.s32.totalorder %s36, %s39
      %p48 = scmp.eq.s32.totalorder %s31, 1
      %p49 = por %p47, %p48
      %p50 = scmp.ne.s32.totalorder %s39, %s40
      %p51 = scmp.eq.s32.totalorder %s31, 0
      %p52 = por %p50, %p51
      %p53 = scmp.ne.s32.totalorder %s39, %s40
      %p54 = scmp.eq.s32.totalorder %s32, 1
      %p55 = por %p53, %p54
      %p57 = scmp.ne.s32.totalorder %s40, %s56
      %p58 = scmp.eq.s32.totalorder %s32, 0
      %p59 = por %p57, %p58
      %s60 = ssub.s32 %s26, %s33
      %p61 = scmp.eq.s32.totalorder %s60, 0
      %s63 = sadd.s32 %s62, 1
      %s64 = scalar_select %p61, %s62, %s63
      %p67 = pneg %p61
      %p68 = scmp.eq.s32.totalorder %s26, 1
      %p69 = por %p67, %p68
      %p70 = scmp.ne.s32.totalorder %s62, %s65
      %p71 = scmp.eq.s32.totalorder %s26, 0
      %p72 = por %p70, %p71
      %p73 = scmp.ne.s32.totalorder %s62, %s65
      %p74 = scmp.eq.s32.totalorder %s31, 1
      %p75 = por %p73, %p74
      %p76 = scmp.ne.s32.totalorder %s65, %s66
      %p77 = scmp.eq.s32.totalorder %s31, 0
      %p78 = por %p76, %p77
      %p79 = scmp.ne.s32.totalorder %s65, %s66
      %p80 = scmp.eq.s32.totalorder %s32, 1
      %p81 = por %p79, %p80
      %p83 = scmp.ne.s32.totalorder %s66, %s82
      %p84 = scmp.eq.s32.totalorder %s32, 0
      %p85 = por %p83, %p84
      %s87 = sadd.s32 %s86, 1
      %p90 = scmp.eq.s32.totalorder %s26, 1
      %p91 = scmp.ne.s32.totalorder %s86, %s88
      %p92 = scmp.eq.s32.totalorder %s26, 0
      %p93 = por %p91, %p92
      %p94 = scmp.ne.s32.totalorder %s86, %s88
      %p95 = scmp.eq.s32.totalorder %s31, 1
      %p96 = por %p94, %p95
      %p97 = scmp.ne.s32.totalorder %s88, %s89
      %p98 = scmp.eq.s32.totalorder %s31, 0
      %p99 = por %p97, %p98
      %p100 = scmp.ne.s32.totalorder %s88, %s89
      %p101 = scmp.eq.s32.totalorder %s32, 1
      %p102 = por %p100, %p101
      %p104 = scmp.ne.s32.totalorder %s89, %s103
      %p105 = scmp.eq.s32.totalorder %s32, 0
      %p106 = por %p104, %p105
      %s108 = sadd.s32 %s107, 1
      %p111 = scmp.eq.s32.totalorder %s26, 1
      %p112 = scmp.ne.s32.totalorder %s107, %s109
      %p113 = scmp.eq.s32.totalorder %s26, 0
      %p114 = por %p112, %p113
      %p115 = scmp.ne.s32.totalorder %s107, %s109
      %p116 = scmp.eq.s32.totalorder %s31, 1
      %p117 = por %p115, %p116
      %p118 = scmp.ne.s32.totalorder %s109, %s110
      %p119 = scmp.eq.s32.totalorder %s31, 0
      %p120 = por %p118, %p119
      %p121 = scmp.ne.s32.totalorder %s109, %s110
      %p122 = scmp.eq.s32.totalorder %s32, 1
      %p123 = por %p121, %p122
      %p125 = scmp.ne.s32.totalorder %s110, %s124
      %p126 = scmp.eq.s32.totalorder %s32, 0
      %p127 = por %p125, %p126
      %s129 = sadd.s32 %s128, 1
      %p132 = scmp.eq.s32.totalorder %s26, 1
      %p133 = scmp.ne.s32.totalorder %s128, %s130
      %p134 = scmp.eq.s32.totalorder %s26, 0
      %p135 = por %p133, %p134
      %p136 = scmp.ne.s32.totalorder %s128, %s130
      %p137 = scmp.eq.s32.totalorder %s31, 1
      %p138 = por %p136, %p137
      %p139 = scmp.ne.s32.totalorder %s130, %s131
      %p140 = scmp.eq.s32.totalorder %s31, 0
      %p141 = por %p139, %p140
      %p142 = scmp.ne.s32.totalorder %s130, %s131
      %p143 = scmp.eq.s32.totalorder %s32, 1
      %p144 = por %p142, %p143
      %p146 = scmp.ne.s32.totalorder %s131, %s145
      %p147 = scmp.eq.s32.totalorder %s32, 0
      %p148 = por %p146, %p147
      %s149 = ssub.s32 %s26, %s33
      %p150 = scmp.eq.s32.totalorder %s149, 0
      %s152 = sadd.s32 %s151, 1
      %s153 = scalar_select %p150, %s151, %s152
      %p156 = pneg %p150
      %p157 = scmp.eq.s32.totalorder %s26, 1
      %p158 = por %p156, %p157
      %p159 = scmp.ne.s32.totalorder %s151, %s154
      %p160 = scmp.eq.s32.totalorder %s26, 0
      %p161 = por %p159, %p160
      %p162 = scmp.ne.s32.totalorder %s151, %s154
      %p163 = scmp.eq.s32.totalorder %s31, 1
      %p164 = por %p162, %p163
      %p165 = scmp.ne.s32.totalorder %s154, %s155
      %p166 = scmp.eq.s32.totalorder %s31, 0
      %p167 = por %p165, %p166
      %p168 = scmp.ne.s32.totalorder %s154, %s155
      %p169 = scmp.eq.s32.totalorder %s32, 1
      %p170 = por %p168, %p169
      %p172 = scmp.ne.s32.totalorder %s155, %s171
      %p173 = scmp.eq.s32.totalorder %s32, 0
      %p174 = por %p172, %p173
      %s175 = ssub.s32 %s26, %s33
      %p176 = scmp.eq.s32.totalorder %s175, 0
      %s178 = sadd.s32 %s177, 1
      %s179 = scalar_select %p176, %s177, %s178
      %p182 = pneg %p176
      %p183 = scmp.eq.s32.totalorder %s26, 1
      %p184 = por %p182, %p183
      %p185 = scmp.ne.s32.totalorder %s177, %s180
      %p186 = scmp.eq.s32.totalorder %s26, 0
      %p187 = por %p185, %p186
      %p188 = scmp.ne.s32.totalorder %s177, %s180
      %p189 = scmp.eq.s32.totalorder %s31, 1
      %p190 = por %p188, %p189
      %p191 = scmp.ne.s32.totalorder %s180, %s181
      %p192 = scmp.eq.s32.totalorder %s31, 0
      %p193 = por %p191, %p192
      %p194 = scmp.ne.s32.totalorder %s180, %s181
      %p195 = scmp.eq.s32.totalorder %s32, 1
      %p196 = por %p194, %p195
      %p198 = scmp.ne.s32.totalorder %s181, %s197
      %p199 = scmp.eq.s32.totalorder %s32, 0
      %p200 = por %p198, %p199
      %p201 = scmp.le.s32.totalorder 1, %s26
      %p202 = scmp.lt.s32.totalorder %s26, 3
      %p203 = pnand %p201, %p202
      %p204 = pneg %p203
      // Predicated region
      $region9: #{tpu_custom_call.1} parent=5 // pred_check
        _
      $region10: #{tpu_custom_call.1} parent=5 // pred_check_branch
        %206 = sbr.rel (%p203) target = $region12
      $region11: #{tpu_custom_call.1} parent=5 // pred_region
        %s207 = ssub.s32 %s26, 1
        // Predicated region
        $region13: #{tpu_custom_call.1} parent=11 // pred_check
          %p208 = pneg %p99
        $region14: #{tpu_custom_call.1} parent=11 // pred_check_branch
          %210 = sbr.rel (%p208) target = $region16
        $region15: #{tpu_custom_call.1} parent=11 // pred_region
          %s212 = ssub.s32 256, 256
          %213 = vsyncadd [#allocation6], %s212
          %s214 = sshll.u32 [#allocation7], 4
          %s215 = int_to_ptr.vmem [resolvable:$true] %s214
          %220 = dma.hbm_to_vmem [thread:$0]  %s2, 256, %s215, [#allocation6], 128, 128, 8
        $region16: #{tpu_custom_call.1} parent=11 // pred_fallthru
          _
        // Predicated region
        $region17: #{tpu_custom_call.1} parent=11 // pred_check
          %p221 = pneg %p120
        $region18: #{tpu_custom_call.1} parent=11 // pred_check_branch
          %223 = sbr.rel (%p221) target = $region20
        $region19: #{tpu_custom_call.1} parent=11 // pred_region
          %s225 = ssub.s32 2048, 2048
          %226 = vsyncadd [#allocation9], %s225
          %s227 = sshll.u32 [#allocation8], 4
          %s228 = int_to_ptr.vmem [resolvable:$true] %s227
          %233 = dma.hbm_to_vmem [thread:$0]  %s3, 2048, %s228, [#allocation9], 128, 128, 8
        $region20: #{tpu_custom_call.1} parent=11 // pred_fallthru
          _
        // Predicated region
        $region21: #{tpu_custom_call.1} parent=11 // pred_check
          %p234 = pneg %p141
        $region22: #{tpu_custom_call.1} parent=11 // pred_check_branch
          %236 = sbr.rel (%p234) target = $region24
        $region23: #{tpu_custom_call.1} parent=11 // pred_region
          %s238 = ssub.s32 256, 256
          %239 = vsyncadd [#allocation9], %s238
          %s240 = sshll.u32 [#allocation10], 4
          %s241 = int_to_ptr.vmem [resolvable:$true] %s240
          %246 = dma.hbm_to_vmem [thread:$0]  %s4, 256, %s241, [#allocation9], 128, 128, 8
        $region24: #{tpu_custom_call.1} parent=11 // pred_fallthru
          _
      $region12: #{tpu_custom_call.1} parent=5 // pred_fallthru
        _
      %p247 = scmp.lt.s32.totalorder %s26, 2
      // Predicated region
      $region25: #{tpu_custom_call.1} parent=5 // pred_check
        %p248 = pneg %p247
      $region26: #{tpu_custom_call.1} parent=5 // pred_check_branch
        %250 = sbr.rel (%p248) target = $region28
      $region27: #{tpu_custom_call.1} parent=5 // pred_region
        // Predicated region
        $region29: #{tpu_custom_call.1} parent=27 // pred_check
          %p251 = pneg %p46
        $region30: #{tpu_custom_call.1} parent=27 // pred_check_branch
          %253 = sbr.rel (%p251) target = $region32
        $region31: #{tpu_custom_call.1} parent=27 // pred_region
          %s254 = sand.u32 %s36, 1
          %s255 = scalar_lea.sflag [#allocation3], %s254
          %s256 = sand.u32 %s36, 1
          %s257 = smul.addr %s256, 64
          %s258 = scalar_lea.vmem [#allocation2], %s257
          %s260 = ssub.s32 1024, 1024
          %261 = vsyncadd %s255, %s260
          %s262 = smul.addr %s26, 8
          %s263 = smul.addr %s262, 128
          %s264 = scalar_lea.hbm %s0, %s263
          %s265 = sshll.u32 %s258, 4
          %s266 = int_to_ptr.vmem [resolvable:$true] %s265
          %271 = dma.hbm_to_vmem [thread:$0]  %s264, 1024, %s266, %s255, 128, 128, 8
        $region32: #{tpu_custom_call.1} parent=27 // pred_fallthru
          _
        // Predicated region
        $region33: #{tpu_custom_call.1} parent=27 // pred_check
          %p272 = pneg %p72
        $region34: #{tpu_custom_call.1} parent=27 // pred_check_branch
          %274 = sbr.rel (%p272) target = $region36
        $region35: #{tpu_custom_call.1} parent=27 // pred_region
          %s275 = sand.u32 %s26, 1
          %s276 = scalar_lea.sflag [#allocation6], %s275
          %s277 = sand.u32 %s62, 1
          %s278 = smul.addr %s277, 64
          %s279 = scalar_lea.vmem [#allocation5], %s278
          %s281 = ssub.s32 1024, 1024
          %282 = vsyncadd %s276, %s281
          %s283 = smul.addr %s26, 8
          %s284 = smul.addr %s283, 128
          %s285 = scalar_lea.hbm %s1, %s284
          %s286 = sshll.u32 %s279, 4
          %s287 = int_to_ptr.vmem [resolvable:$true] %s286
          %292 = dma.hbm_to_vmem [thread:$0]  %s285, 1024, %s287, %s276, 128, 128, 8
        $region36: #{tpu_custom_call.1} parent=27 // pred_fallthru
          _
      $region28: #{tpu_custom_call.1} parent=5 // pred_fallthru
        _
      %p293 = scmp.le.s32.totalorder 1, %s26
      %p294 = scmp.lt.s32.totalorder %s26, 3
      %p295 = pnand %p293, %p294
      %p296 = pneg %p295
      // Predicated region
      $region37: #{tpu_custom_call.1} parent=5 // pred_check
        _
      $region38: #{tpu_custom_call.1} parent=5 // pred_check_branch
        %298 = sbr.rel (%p295) target = $region40
      $region39: #{tpu_custom_call.1} parent=5 // pred_region
        %s299 = ssub.s32 %s26, 1
        %s300 = sand.u32 %s39, 1
        %s301 = scalar_lea.sflag [#allocation3], %s300
        %s302 = sand.u32 %s39, 1
        %s303 = smul.addr %s302, 64
        %s304 = scalar_lea.vmem [#allocation2], %s303
        // Predicated region
        $region41: #{tpu_custom_call.1} parent=39 // pred_check
          %p305 = pneg %p52
        $region42: #{tpu_custom_call.1} parent=39 // pred_check_branch
          %307 = sbr.rel (%p305) target = $region44
        $region43: #{tpu_custom_call.1} parent=39 // pred_region
          %308 = dma.done %s301, 1024
        $region44: #{tpu_custom_call.1} parent=39 // pred_fallthru
          _
        %s309 = sand.u32 %s31, 1
        %s310 = scalar_lea.sflag [#allocation6], %s309
        %s311 = sand.u32 %s65, 1
        %s312 = smul.addr %s311, 64
        %s313 = scalar_lea.vmem [#allocation5], %s312
        // Predicated region
        $region45: #{tpu_custom_call.1} parent=39 // pred_check
          %p314 = pneg %p78
        $region46: #{tpu_custom_call.1} parent=39 // pred_check_branch
          %316 = sbr.rel (%p314) target = $region48
        $region47: #{tpu_custom_call.1} parent=39 // pred_region
          %317 = dma.done %s310, 1024
        $region48: #{tpu_custom_call.1} parent=39 // pred_fallthru
          _
        // Predicated region
        $region49: #{tpu_custom_call.1} parent=39 // pred_check
          %p318 = pneg %p99
        $region50: #{tpu_custom_call.1} parent=39 // pred_check_branch
          %320 = sbr.rel (%p318) target = $region52
        $region51: #{tpu_custom_call.1} parent=39 // pred_region
          %321 = dma.done [#allocation6], 256
        $region52: #{tpu_custom_call.1} parent=39 // pred_fallthru
          _
        // Predicated region
        $region53: #{tpu_custom_call.1} parent=39 // pred_check
          %p322 = pneg %p120
        $region54: #{tpu_custom_call.1} parent=39 // pred_check_branch
          %324 = sbr.rel (%p322) target = $region56
        $region55: #{tpu_custom_call.1} parent=39 // pred_region
          %325 = dma.done [#allocation9], 2048
        $region56: #{tpu_custom_call.1} parent=39 // pred_fallthru
          _
        // Predicated region
        $region57: #{tpu_custom_call.1} parent=39 // pred_check
          %p326 = pneg %p141
        $region58: #{tpu_custom_call.1} parent=39 // pred_check_branch
          %328 = sbr.rel (%p326) target = $region60
        $region59: #{tpu_custom_call.1} parent=39 // pred_region
          %329 = dma.done [#allocation9], 256
        $region60: #{tpu_custom_call.1} parent=39 // pred_fallthru
          _
        %s330 = sand.u32 %s39, 1
        %s331 = scalar_lea.sflag [#allocation3], %s330
        %s332 = sand.u32 %s39, 1
        %s333 = smul.addr %s332, 64
        %s334 = scalar_lea.vmem [#allocation2], %s333
        %p335 = pneg %p52
        %p336 = pneg %p49
        %s337 = sand.u32 %s31, 1
        %s338 = scalar_lea.sflag [#allocation6], %s337
        %s339 = sand.u32 %s65, 1
        %s340 = smul.addr %s339, 64
        %s341 = scalar_lea.vmem [#allocation5], %s340
        %p342 = pneg %p78
        %p343 = pneg %p75
        %p344 = pneg %p99
        %p345 = pneg %p96
        %p346 = pneg %p120
        %p347 = pneg %p117
        %p348 = pneg %p141
        %p349 = pneg %p138
        %p350 = pneg %p167
        %p351 = pneg %p164
        %s352 = sand.u32 %s154, 1
        %s353 = scalar_lea.sflag [#allocation4], %s352
        %s354 = sand.u32 %s154, 1
        %s355 = smul.addr %s354, 16
        %s356 = scalar_lea.vmem [#allocation11], %s355
        %p357 = pneg %p193
        %p358 = pneg %p190
        %s359 = sand.u32 %s180, 1
        %s360 = scalar_lea.sflag [#allocation13], %s359
        %s361 = sand.u32 %s180, 1
        %s362 = smul.addr %s361, 16
        %s363 = scalar_lea.vmem [#allocation12], %s362
        %v364 = vld [vmem:[%s304] sm:$0xff]
        %v365 = vld [vmem:[%s304 + $0x8] sm:$0xff]
        %v366 = vld [vmem:[%s304 + $0x10] sm:$0xff]
        %v367 = vld [vmem:[%s304 + $0x18] sm:$0xff]
        %v368 = vld [vmem:[%s304 + $0x20] sm:$0xff]
        %v369 = vld [vmem:[%s304 + $0x28] sm:$0xff]
        %v370 = vld [vmem:[%s304 + $0x30] sm:$0xff]
        %v371 = vld [vmem:[%s304 + $0x38] sm:$0xff]
        %v372 = vld [vmem:[%s313] sm:$0xff]
        %v373 = vld [vmem:[%s313 + $0x8] sm:$0xff]
        %v374 = vld [vmem:[%s313 + $0x10] sm:$0xff]
        %v375 = vld [vmem:[%s313 + $0x18] sm:$0xff]
        %v376 = vld [vmem:[%s313 + $0x20] sm:$0xff]
        %v377 = vld [vmem:[%s313 + $0x28] sm:$0xff]
        %v378 = vld [vmem:[%s313 + $0x30] sm:$0xff]
        %v379 = vld [vmem:[%s313 + $0x38] sm:$0xff]
        %v380 = vld [vmem:[#allocation7] sm:$0xff]
        %v381 = vld [vmem:[#allocation7 + $0x8] sm:$0xff]
        %v382 = vld [vmem:[#allocation8] sm:$0xff]
        %v383 = vld [vmem:[#allocation8 + $0x8] sm:$0xff]
        %v384 = vld [vmem:[#allocation8 + $0x10] sm:$0xff]
        %v385 = vld [vmem:[#allocation8 + $0x18] sm:$0xff]
        %v386 = vld [vmem:[#allocation8 + $0x20] sm:$0xff]
        %v387 = vld [vmem:[#allocation8 + $0x28] sm:$0xff]
        %v388 = vld [vmem:[#allocation8 + $0x30] sm:$0xff]
        %v389 = vld [vmem:[#allocation8 + $0x38] sm:$0xff]
        %v390 = vld [vmem:[#allocation8 + $0x40] sm:$0xff]
        %v391 = vld [vmem:[#allocation8 + $0x48] sm:$0xff]
        %v392 = vld [vmem:[#allocation8 + $0x50] sm:$0xff]
        %v393 = vld [vmem:[#allocation8 + $0x58] sm:$0xff]
        %v394 = vld [vmem:[#allocation8 + $0x60] sm:$0xff]
        %v395 = vld [vmem:[#allocation8 + $0x68] sm:$0xff]
        %v396 = vld [vmem:[#allocation8 + $0x70] sm:$0xff]
        %v397 = vld [vmem:[#allocation8 + $0x78] sm:$0xff]
        %v398 = vld [vmem:[#allocation10] sm:$0xff]
        %v399 = vld [vmem:[#allocation10 + $0x8] sm:$0xff]
        %v400 = vadd.f32 %v372, %v374
        %v401 = vadd.f32 %v400, %v376
        %v402 = vadd.f32 %v401, %v378
        %v403 = vadd.f32 %v373, %v375
        %v404 = vadd.f32 %v403, %v377
        %v405 = vadd.f32 %v404, %v379
        %v406 = vadd.f32 %v364, %v366
        %v407 = vadd.f32 %v406, %v368
        %v408 = vadd.f32 %v407, %v370
        %v409 = vadd.f32 %v365, %v367
        %v410 = vadd.f32 %v409, %v369
        %v411 = vadd.f32 %v410, %v371
        %v412 = vmul.f32 %v364, %v372
        %v413 = vmul.f32 %v365, %v373
        %v414 = vmul.f32 %v366, %v374
        %v415 = vmul.f32 %v367, %v375
        %v416 = vmul.f32 %v368, %v376
        %v417 = vmul.f32 %v369, %v377
        %v418 = vmul.f32 %v370, %v378
        %v419 = vmul.f32 %v371, %v379
        %v420 = vadd.f32 %v412, %v414
        %v421 = vadd.f32 %v420, %v416
        %v422 = vadd.f32 %v421, %v418
        %v423 = vadd.f32 %v413, %v415
        %v424 = vadd.f32 %v423, %v417
        %v425 = vadd.f32 %v424, %v419
        %v426 = vmul.f32 %v364, %v364
        %v427 = vmul.f32 %v365, %v365
        %v428 = vmul.f32 %v366, %v366
        %v429 = vmul.f32 %v367, %v367
        %v430 = vmul.f32 %v368, %v368
        %v431 = vmul.f32 %v369, %v369
        %v432 = vmul.f32 %v370, %v370
        %v433 = vmul.f32 %v371, %v371
        %v434 = vadd.f32 %v426, %v428
        %v435 = vadd.f32 %v434, %v430
        %v436 = vadd.f32 %v435, %v432
        %v437 = vadd.f32 %v427, %v429
        %v438 = vadd.f32 %v437, %v431
        %v439 = vadd.f32 %v438, %v433
        %vm440 = vcmask 130048
        %v442 = vsel %vm440, %v380, 0
        %v445 = vsel %vm440, %v381, 0
        %447 = vmatprep.subr.mxu0 0.0
        %448 = vmatpush1.msra.mxu0 %v402
        %449 = vmatprep.subr.mxu0 0.0
        %450 = vmatpush1.msra.mxu0 %v405
        %451 = vmatprep.subr.mxu0 0.0
        %452 = vmatpush1.msra.mxu0 0.0
        %453 = vmatprep.subr.mxu0 0.0
        %454 = vmatpush1.msra.mxu0 0.0
        %455 = vmatprep.subr.mxu0 0.0
        %456 = vmatpush1.msra.mxu0 0.0
        %457 = vmatprep.subr.mxu0 0.0
        %458 = vmatpush1.msra.mxu0 0.0
        %459 = vmatprep.subr.mxu0 0.0
        %460 = vmatpush1.msra.mxu0 0.0
        %461 = vmatprep.subr.mxu0 0.0
        %462 = vmatpush1.msra.mxu0 0.0
        %463 = vmatprep.subr.mxu0 0.0
        %464 = vmatpush1.msra.mxu0 0.0
        %465 = vmatprep.subr.mxu0 0.0
        %466 = vmatpush1.msra.mxu0 0.0
        %467 = vmatprep.subr.mxu0 0.0
        %468 = vmatpush1.msra.mxu0 0.0
        %469 = vmatprep.subr.mxu0 0.0
        %470 = vmatpush1.msra.mxu0 0.0
        %471 = vmatprep.subr.mxu0 0.0
        %472 = vmatpush1.msra.mxu0 0.0
        %473 = vmatprep.subr.mxu0 0.0
        %474 = vmatpush1.msra.mxu0 0.0
        %475 = vmatprep.subr.mxu0 0.0
        %476 = vmatpush1.msra.mxu0 0.0
        %477 = vmatprep.subr.mxu0 0.0
        %478 = vmatpush1.msra.mxu0 0.0
        %479 = vmatprep.subr.mxu0 0.0
        %480 = vmatpush1.msra.mxu0 0.0
        %481 = vmatprep.subr.mxu0 0.0
        %482 = vmatpush1.msra.mxu0 0.0
        %483 = vmatprep.subr.mxu0 0.0
        %484 = vmatpush1.msra.mxu0 0.0
        %485 = vmatprep.subr.mxu0 0.0
        %486 = vmatpush1.msra.mxu0 0.0
        %487 = vmatprep.subr.mxu0 0.0
        %488 = vmatpush1.msra.mxu0 0.0
        %489 = vmatprep.subr.mxu0 0.0
        %490 = vmatpush1.msra.mxu0 0.0
        %491 = vmatprep.subr.mxu0 0.0
        %492 = vmatpush1.msra.mxu0 0.0
        %493 = vmatprep.subr.mxu0 0.0
        %494 = vmatpush1.msra.mxu0 0.0
        %495 = vmatprep.subr.mxu0 0.0
        %496 = vmatpush1.msra.mxu0 0.0
        %497 = vmatprep.subr.mxu0 0.0
        %498 = vmatpush1.msra.mxu0 0.0
        %499 = vmatprep.subr.mxu0 0.0
        %500 = vmatpush1.msra.mxu0 0.0
        %501 = vmatprep.subr.mxu0 0.0
        %502 = vmatpush1.msra.mxu0 0.0
        %503 = vmatprep.subr.mxu0 0.0
        %504 = vmatpush1.msra.mxu0 0.0
        %505 = vmatprep.subr.mxu0 0.0
        %506 = vmatpush1.msra.mxu0 0.0
        %507 = vmatprep.subr.mxu0 0.0
        %508 = vmatpush1.msra.mxu0 0.0
        %509 = vmatprep.subr.mxu0 0.0
        %510 = vmatpush1.msra.mxu0 0.0
        %511 = vmatprep.mubr.f32.mxu0 0.0
        %512 = vmatmul.mubr.f32.gmra.mrb[0].mxu0 %v442
        %v513 = vpop.f32.mrb[0].mxu0
        %v514 = vadd.f32 0.0, %v513
        %v515 = vpop.f32.mrb[0].mxu0
        %516 = vmatprep.mubr.f32.mxu0 0.0
        %517 = vmatmul.mubr.f32.gmra.mrb[0].mxu0 %v445
        %v518 = vpop.f32.mrb[0].mxu0
        %v519 = vadd.f32 0.0, %v518
        %v520 = vpop.f32.mrb[0].mxu0
        %521 = vdwg.mxu0
        %522 = vmatprep.subr.mxu0 0.0
        %523 = vmatpush1.msra.mxu0 %v408
        %524 = vmatprep.subr.mxu0 0.0
        %525 = vmatpush1.msra.mxu0 %v411
        %526 = vmatprep.subr.mxu0 0.0
        %527 = vmatpush1.msra.mxu0 0.0
        %528 = vmatprep.subr.mxu0 0.0
        %529 = vmatpush1.msra.mxu0 0.0
        %530 = vmatprep.subr.mxu0 0.0
        %531 = vmatpush1.msra.mxu0 0.0
        %532 = vmatprep.subr.mxu0 0.0
        %533 = vmatpush1.msra.mxu0 0.0
        %534 = vmatprep.subr.mxu0 0.0
        %535 = vmatpush1.msra.mxu0 0.0
        %536 = vmatprep.subr.mxu0 0.0
        %537 = vmatpush1.msra.mxu0 0.0
        %538 = vmatprep.subr.mxu0 0.0
        %539 = vmatpush1.msra.mxu0 0.0
        %540 = vmatprep.subr.mxu0 0.0
        %541 = vmatpush1.msra.mxu0 0.0
        %542 = vmatprep.subr.mxu0 0.0
        %543 = vmatpush1.msra.mxu0 0.0
        %544 = vmatprep.subr.mxu0 0.0
        %545 = vmatpush1.msra.mxu0 0.0
        %546 = vmatprep.subr.mxu0 0.0
        %547 = vmatpush1.msra.mxu0 0.0
        %548 = vmatprep.subr.mxu0 0.0
        %549 = vmatpush1.msra.mxu0 0.0
        %550 = vmatprep.subr.mxu0 0.0
        %551 = vmatpush1.msra.mxu0 0.0
        %552 = vmatprep.subr.mxu0 0.0
        %553 = vmatpush1.msra.mxu0 0.0
        %554 = vmatprep.subr.mxu0 0.0
        %555 = vmatpush1.msra.mxu0 0.0
        %556 = vmatprep.subr.mxu0 0.0
        %557 = vmatpush1.msra.mxu0 0.0
        %558 = vmatprep.subr.mxu0 0.0
        %559 = vmatpush1.msra.mxu0 0.0
        %560 = vmatprep.subr.mxu0 0.0
        %561 = vmatpush1.msra.mxu0 0.0
        %562 = vmatprep.subr.mxu0 0.0
        %563 = vmatpush1.msra.mxu0 0.0
        %564 = vmatprep.subr.mxu0 0.0
        %565 = vmatpush1.msra.mxu0 0.0
        %566 = vmatprep.subr.mxu0 0.0
        %567 = vmatpush1.msra.mxu0 0.0
        %568 = vmatprep.subr.mxu0 0.0
        %569 = vmatpush1.msra.mxu0 0.0
        %570 = vmatprep.subr.mxu0 0.0
        %571 = vmatpush1.msra.mxu0 0.0
        %572 = vmatprep.subr.mxu0 0.0
        %573 = vmatpush1.msra.mxu0 0.0
        %574 = vmatprep.subr.mxu0 0.0
        %575 = vmatpush1.msra.mxu0 0.0
        %576 = vmatprep.subr.mxu0 0.0
        %577 = vmatpush1.msra.mxu0 0.0
        %578 = vmatprep.subr.mxu0 0.0
        %579 = vmatpush1.msra.mxu0 0.0
        %580 = vmatprep.subr.mxu0 0.0
        %581 = vmatpush1.msra.mxu0 0.0
        %582 = vmatprep.subr.mxu0 0.0
        %583 = vmatpush1.msra.mxu0 0.0
        %584 = vmatprep.subr.mxu0 0.0
        %585 = vmatpush1.msra.mxu0 0.0
        %586 = vmatprep.mubr.f32.mxu0 0.0
        %587 = vmatmul.mubr.f32.gmra.mrb[0].mxu0 %v442
        %v588 = vpop.f32.mrb[0].mxu0
        %v589 = vadd.f32 0.0, %v588
        %v590 = vpop.f32.mrb[0].mxu0
        %591 = vmatprep.mubr.f32.mxu0 0.0
        %592 = vmatmul.mubr.f32.gmra.mrb[0].mxu0 %v445
        %v593 = vpop.f32.mrb[0].mxu0
        %v594 = vadd.f32 0.0, %v593
        %v595 = vpop.f32.mrb[0].mxu0
        %596 = vdwg.mxu0
        %597 = vmatprep.subr.mxu0 0.0
        %598 = vmatpush1.msra.mxu0 %v422
        %599 = vmatprep.subr.mxu0 0.0
        %600 = vmatpush1.msra.mxu0 %v425
        %601 = vmatprep.subr.mxu0 0.0
        %602 = vmatpush1.msra.mxu0 0.0
        %603 = vmatprep.subr.mxu0 0.0
        %604 = vmatpush1.msra.mxu0 0.0
        %605 = vmatprep.subr.mxu0 0.0
        %606 = vmatpush1.msra.mxu0 0.0
        %607 = vmatprep.subr.mxu0 0.0
        %608 = vmatpush1.msra.mxu0 0.0
        %609 = vmatprep.subr.mxu0 0.0
        %610 = vmatpush1.msra.mxu0 0.0
        %611 = vmatprep.subr.mxu0 0.0
        %612 = vmatpush1.msra.mxu0 0.0
        %613 = vmatprep.subr.mxu0 0.0
        %614 = vmatpush1.msra.mxu0 0.0
        %615 = vmatprep.subr.mxu0 0.0
        %616 = vmatpush1.msra.mxu0 0.0
        %617 = vmatprep.subr.mxu0 0.0
        %618 = vmatpush1.msra.mxu0 0.0
        %619 = vmatprep.subr.mxu0 0.0
        %620 = vmatpush1.msra.mxu0 0.0
        %621 = vmatprep.subr.mxu0 0.0
        %622 = vmatpush1.msra.mxu0 0.0
        %623 = vmatprep.subr.mxu0 0.0
        %624 = vmatpush1.msra.mxu0 0.0
        %625 = vmatprep.subr.mxu0 0.0
        %626 = vmatpush1.msra.mxu0 0.0
        %627 = vmatprep.subr.mxu0 0.0
        %628 = vmatpush1.msra.mxu0 0.0
        %629 = vmatprep.subr.mxu0 0.0
        %630 = vmatpush1.msra.mxu0 0.0
        %631 = vmatprep.subr.mxu0 0.0
        %632 = vmatpush1.msra.mxu0 0.0
        %633 = vmatprep.subr.mxu0 0.0
        %634 = vmatpush1.msra.mxu0 0.0
        %635 = vmatprep.subr.mxu0 0.0
        %636 = vmatpush1.msra.mxu0 0.0
        %637 = vmatprep.subr.mxu0 0.0
        %638 = vmatpush1.msra.mxu0 0.0
        %639 = vmatprep.subr.mxu0 0.0
        %640 = vmatpush1.msra.mxu0 0.0
        %641 = vmatprep.subr.mxu0 0.0
        %642 = vmatpush1.msra.mxu0 0.0
        %643 = vmatprep.subr.mxu0 0.0
        %644 = vmatpush1.msra.mxu0 0.0
        %645 = vmatprep.subr.mxu0 0.0
        %646 = vmatpush1.msra.mxu0 0.0
        %647 = vmatprep.subr.mxu0 0.0
        %648 = vmatpush1.msra.mxu0 0.0
        %649 = vmatprep.subr.mxu0 0.0
        %650 = vmatpush1.msra.mxu0 0.0
        %651 = vmatprep.subr.mxu0 0.0
        %652 = vmatpush1.msra.mxu0 0.0
        %653 = vmatprep.subr.mxu0 0.0
        %654 = vmatpush1.msra.mxu0 0.0
        %655 = vmatprep.subr.mxu0 0.0
        %656 = vmatpush1.msra.mxu0 0.0
        %657 = vmatprep.subr.mxu0 0.0
        %658 = vmatpush1.msra.mxu0 0.0
        %659 = vmatprep.subr.mxu0 0.0
        %660 = vmatpush1.msra.mxu0 0.0
        %661 = vmatprep.mubr.f32.mxu0 0.0
        %662 = vmatmul.mubr.f32.gmra.mrb[0].mxu0 %v442
        %v663 = vpop.f32.mrb[0].mxu0
        %v664 = vadd.f32 0.0, %v663
        %v665 = vpop.f32.mrb[0].mxu0
        %666 = vmatprep.mubr.f32.mxu0 0.0
        %667 = vmatmul.mubr.f32.gmra.mrb[0].mxu0 %v445
        %v668 = vpop.f32.mrb[0].mxu0
        %v669 = vadd.f32 0.0, %v668
        %v670 = vpop.f32.mrb[0].mxu0
        %671 = vdwg.mxu0
        %672 = vmatprep.subr.mxu0 0.0
        %673 = vmatpush1.msra.mxu0 %v436
        %674 = vmatprep.subr.mxu0 0.0
        %675 = vmatpush1.msra.mxu0 %v439
        %676 = vmatprep.subr.mxu0 0.0
        %677 = vmatpush1.msra.mxu0 0.0
        %678 = vmatprep.subr.mxu0 0.0
        %679 = vmatpush1.msra.mxu0 0.0
        %680 = vmatprep.subr.mxu0 0.0
        %681 = vmatpush1.msra.mxu0 0.0
        %682 = vmatprep.subr.mxu0 0.0
        %683 = vmatpush1.msra.mxu0 0.0
        %684 = vmatprep.subr.mxu0 0.0
        %685 = vmatpush1.msra.mxu0 0.0
        %686 = vmatprep.subr.mxu0 0.0
        %687 = vmatpush1.msra.mxu0 0.0
        %688 = vmatprep.subr.mxu0 0.0
        %689 = vmatpush1.msra.mxu0 0.0
        %690 = vmatprep.subr.mxu0 0.0
        %691 = vmatpush1.msra.mxu0 0.0
        %692 = vmatprep.subr.mxu0 0.0
        %693 = vmatpush1.msra.mxu0 0.0
        %694 = vmatprep.subr.mxu0 0.0
        %695 = vmatpush1.msra.mxu0 0.0
        %696 = vmatprep.subr.mxu0 0.0
        %697 = vmatpush1.msra.mxu0 0.0
        %698 = vmatprep.subr.mxu0 0.0
        %699 = vmatpush1.msra.mxu0 0.0
        %700 = vmatprep.subr.mxu0 0.0
        %701 = vmatpush1.msra.mxu0 0.0
        %702 = vmatprep.subr.mxu0 0.0
        %703 = vmatpush1.msra.mxu0 0.0
        %704 = vmatprep.subr.mxu0 0.0
        %705 = vmatpush1.msra.mxu0 0.0
        %706 = vmatprep.subr.mxu0 0.0
        %707 = vmatpush1.msra.mxu0 0.0
        %708 = vmatprep.subr.mxu0 0.0
        %709 = vmatpush1.msra.mxu0 0.0
        %710 = vmatprep.subr.mxu0 0.0
        %711 = vmatpush1.msra.mxu0 0.0
        %712 = vmatprep.subr.mxu0 0.0
        %713 = vmatpush1.msra.mxu0 0.0
        %714 = vmatprep.subr.mxu0 0.0
        %715 = vmatpush1.msra.mxu0 0.0
        %716 = vmatprep.subr.mxu0 0.0
        %717 = vmatpush1.msra.mxu0 0.0
        %718 = vmatprep.subr.mxu0 0.0
        %719 = vmatpush1.msra.mxu0 0.0
        %720 = vmatprep.subr.mxu0 0.0
        %721 = vmatpush1.msra.mxu0 0.0
        %722 = vmatprep.subr.mxu0 0.0
        %723 = vmatpush1.msra.mxu0 0.0
        %724 = vmatprep.subr.mxu0 0.0
        %725 = vmatpush1.msra.mxu0 0.0
        %726 = vmatprep.subr.mxu0 0.0
        %727 = vmatpush1.msra.mxu0 0.0
        %728 = vmatprep.subr.mxu0 0.0
        %729 = vmatpush1.msra.mxu0 0.0
        %730 = vmatprep.subr.mxu0 0.0
        %731 = vmatpush1.msra.mxu0 0.0
        %732 = vmatprep.subr.mxu0 0.0
        %733 = vmatpush1.msra.mxu0 0.0
        %734 = vmatprep.subr.mxu0 0.0
        %735 = vmatpush1.msra.mxu0 0.0
        %736 = vmatprep.mubr.f32.mxu0 0.0
        %737 = vmatmul.mubr.f32.gmra.mrb[0].mxu0 %v442
        %v738 = vpop.f32.mrb[0].mxu0
        %v739 = vadd.f32 0.0, %v738
        %v740 = vpop.f32.mrb[0].mxu0
        %741 = vmatprep.mubr.f32.mxu0 0.0
        %742 = vmatmul.mubr.f32.gmra.mrb[0].mxu0 %v445
        %v743 = vpop.f32.mrb[0].mxu0
        %v744 = vadd.f32 0.0, %v743
        %v745 = vpop.f32.mrb[0].mxu0
        %746 = vdwg.mxu0
        %747 = vmatprep.subr.mxu0 0.0
        %748 = vmatpush1.msra.mxu0 %v382
        %749 = vmatprep.subr.mxu0 0.0
        %750 = vmatpush1.msra.mxu0 %v383
        %751 = vmatprep.subr.mxu0 0.0
        %752 = vmatpush1.msra.mxu0 %v384
        %753 = vmatprep.subr.mxu0 0.0
        %754 = vmatpush1.msra.mxu0 %v385
        %755 = vmatprep.subr.mxu0 0.0
        %756 = vmatpush1.msra.mxu0 %v386
        %757 = vmatprep.subr.mxu0 0.0
        %758 = vmatpush1.msra.mxu0 %v387
        %759 = vmatprep.subr.mxu0 0.0
        %760 = vmatpush1.msra.mxu0 %v388
        %761 = vmatprep.subr.mxu0 0.0
        %762 = vmatpush1.msra.mxu0 %v389
        %763 = vmatprep.subr.mxu0 0.0
        %764 = vmatpush1.msra.mxu0 %v390
        %765 = vmatprep.subr.mxu0 0.0
        %766 = vmatpush1.msra.mxu0 %v391
        %767 = vmatprep.subr.mxu0 0.0
        %768 = vmatpush1.msra.mxu0 %v392
        %769 = vmatprep.subr.mxu0 0.0
        %770 = vmatpush1.msra.mxu0 %v393
        %771 = vmatprep.subr.mxu0 0.0
        %772 = vmatpush1.msra.mxu0 %v394
        %773 = vmatprep.subr.mxu0 0.0
        %774 = vmatpush1.msra.mxu0 %v395
        %775 = vmatprep.subr.mxu0 0.0
        %776 = vmatpush1.msra.mxu0 %v396
        %777 = vmatprep.subr.mxu0 0.0
        %778 = vmatpush1.msra.mxu0 %v397
        %779 = vmatprep.subr.mxu0 0.0
        %780 = vmatpush1.msra.mxu0 0.0
        %781 = vmatprep.subr.mxu0 0.0
        %782 = vmatpush1.msra.mxu0 0.0
        %783 = vmatprep.subr.mxu0 0.0
        %784 = vmatpush1.msra.mxu0 0.0
        %785 = vmatprep.subr.mxu0 0.0
        %786 = vmatpush1.msra.mxu0 0.0
        %787 = vmatprep.subr.mxu0 0.0
        %788 = vmatpush1.msra.mxu0 0.0
        %789 = vmatprep.subr.mxu0 0.0
        %790 = vmatpush1.msra.mxu0 0.0
        %791 = vmatprep.subr.mxu0 0.0
        %792 = vmatpush1.msra.mxu0 0.0
        %793 = vmatprep.subr.mxu0 0.0
        %794 = vmatpush1.msra.mxu0 0.0
        %795 = vmatprep.subr.mxu0 0.0
        %796 = vmatpush1.msra.mxu0 0.0
        %797 = vmatprep.subr.mxu0 0.0
        %798 = vmatpush1.msra.mxu0 0.0
        %799 = vmatprep.subr.mxu0 0.0
        %800 = vmatpush1.msra.mxu0 0.0
        %801 = vmatprep.subr.mxu0 0.0
        %802 = vmatpush1.msra.mxu0 0.0
        %803 = vmatprep.subr.mxu0 0.0
        %804 = vmatpush1.msra.mxu0 0.0
        %805 = vmatprep.subr.mxu0 0.0
        %806 = vmatpush1.msra.mxu0 0.0
        %807 = vmatprep.subr.mxu0 0.0
        %808 = vmatpush1.msra.mxu0 0.0
        %809 = vmatprep.subr.mxu0 0.0
        %810 = vmatpush1.msra.mxu0 0.0
        %811 = vmatprep.mubr.f32.mxu0 0.0
        %812 = vmatmul.mubr.f32.gmra.mrb[0].mxu0 %v514
        %v813 = vpop.f32.mrb[0].mxu0
        %v814 = vadd.f32 0.0, %v813
        %v815 = vpop.f32.mrb[0].mxu0
        %816 = vmatprep.mubr.f32.mxu0 0.0
        %817 = vmatmul.mubr.f32.gmra.mrb[0].mxu0 %v519
        %v818 = vpop.f32.mrb[0].mxu0
        %v819 = vadd.f32 0.0, %v818
        %v820 = vpop.f32.mrb[0].mxu0
        %821 = vmatprep.mubr.f32.mxu0 0.0
        %822 = vmatmul.mubr.f32.gmra.mrb[0].mxu0 %v589
        %v823 = vpop.f32.mrb[0].mxu0
        %v824 = vadd.f32 0.0, %v823
        %v825 = vpop.f32.mrb[0].mxu0
        %826 = vmatprep.mubr.f32.mxu0 0.0
        %827 = vmatmul.mubr.f32.gmra.mrb[0].mxu0 %v594
        %v828 = vpop.f32.mrb[0].mxu0
        %v829 = vadd.f32 0.0, %v828
        %v830 = vpop.f32.mrb[0].mxu0
        %831 = vmatprep.mubr.f32.mxu0 0.0
        %832 = vmatmul.mubr.f32.gmra.mrb[0].mxu0 %v664
        %v833 = vpop.f32.mrb[0].mxu0
        %v834 = vadd.f32 0.0, %v833
        %v835 = vpop.f32.mrb[0].mxu0
        %836 = vmatprep.mubr.f32.mxu0 0.0
        %837 = vmatmul.mubr.f32.gmra.mrb[0].mxu0 %v669
        %v838 = vpop.f32.mrb[0].mxu0
        %v839 = vadd.f32 0.0, %v838
        %v840 = vpop.f32.mrb[0].mxu0
        %841 = vmatprep.mubr.f32.mxu0 0.0
        %842 = vmatmul.mubr.f32.gmra.mrb[0].mxu0 %v739
        %v843 = vpop.f32.mrb[0].mxu0
        %v844 = vadd.f32 0.0, %v843
        %v845 = vpop.f32.mrb[0].mxu0
        %846 = vmatprep.mubr.f32.mxu0 0.0
        %847 = vmatmul.mubr.f32.gmra.mrb[0].mxu0 %v744
        %v848 = vpop.f32.mrb[0].mxu0
        %v849 = vadd.f32 0.0, %v848
        %v850 = vpop.f32.mrb[0].mxu0
        %851 = vdwg.mxu0
        %v852 = vmul.f32 %v814, %v398
        %v853 = vmul.f32 %v819, %v399
        %v854 = vmul.f32 %v824, %v398
        %v855 = vmul.f32 %v829, %v399
        %v856 = vmul.f32 %v834, %v398
        %v857 = vmul.f32 %v839, %v399
        %v858 = vmul.f32 %v854, %v852
        %v859 = vmul.f32 %v855, %v853
        %v860 = vsub.f32 %v856, %v858
        %v861 = vsub.f32 %v857, %v859
        %v862 = vmul.f32 %v844, %v398
        %v863 = vmul.f32 %v849, %v399
        %v864 = vmul.f32 %v854, %v854
        %v865 = vmul.f32 %v855, %v855
        %v866 = vsub.f32 %v862, %v864
        %v867 = vsub.f32 %v863, %v865
        %v868 = vadd.f32 %v866, 0.01
        %v869 = vadd.f32 %v867, 0.01
        %v870 = vrcp.pop %v868
        %v871 = vmul.f32 %v860, %v870
        %v872 = vrcp.pop %v869
        %v873 = vmul.f32 %v861, %v872
        %v874 = vmul.f32 %v871, %v854
        %v875 = vmul.f32 %v873, %v855
        %v876 = vsub.f32 %v852, %v874
        %v877 = vsub.f32 %v853, %v875
        %878 = vmatprep.subr.mxu0 0.0
        %879 = vmatpush1.msra.mxu0 %v871
        %880 = vmatprep.subr.mxu0 0.0
        %881 = vmatpush1.msra.mxu0 %v873
        %882 = vmatprep.subr.mxu0 0.0
        %883 = vmatpush1.msra.mxu0 0.0
        %884 = vmatprep.subr.mxu0 0.0
        %885 = vmatpush1.msra.mxu0 0.0
        %886 = vmatprep.subr.mxu0 0.0
        %887 = vmatpush1.msra.mxu0 0.0
        %888 = vmatprep.subr.mxu0 0.0
        %889 = vmatpush1.msra.mxu0 0.0
        %890 = vmatprep.subr.mxu0 0.0
        %891 = vmatpush1.msra.mxu0 0.0
        %892 = vmatprep.subr.mxu0 0.0
        %893 = vmatpush1.msra.mxu0 0.0
        %894 = vmatprep.subr.mxu0 0.0
        %895 = vmatpush1.msra.mxu0 0.0
        %896 = vmatprep.subr.mxu0 0.0
        %897 = vmatpush1.msra.mxu0 0.0
        %898 = vmatprep.subr.mxu0 0.0
        %899 = vmatpush1.msra.mxu0 0.0
        %900 = vmatprep.subr.mxu0 0.0
        %901 = vmatpush1.msra.mxu0 0.0
        %902 = vmatprep.subr.mxu0 0.0
        %903 = vmatpush1.msra.mxu0 0.0
        %904 = vmatprep.subr.mxu0 0.0
        %905 = vmatpush1.msra.mxu0 0.0
        %906 = vmatprep.subr.mxu0 0.0
        %907 = vmatpush1.msra.mxu0 0.0
        %908 = vmatprep.subr.mxu0 0.0
        %909 = vmatpush1.msra.mxu0 0.0
        %910 = vmatprep.subr.mxu0 0.0
        %911 = vmatpush1.msra.mxu0 0.0
        %912 = vmatprep.subr.mxu0 0.0
        %913 = vmatpush1.msra.mxu0 0.0
        %914 = vmatprep.subr.mxu0 0.0
        %915 = vmatpush1.msra.mxu0 0.0
        %916 = vmatprep.subr.mxu0 0.0
        %917 = vmatpush1.msra.mxu0 0.0
        %918 = vmatprep.subr.mxu0 0.0
        %919 = vmatpush1.msra.mxu0 0.0
        %920 = vmatprep.subr.mxu0 0.0
        %921 = vmatpush1.msra.mxu0 0.0
        %922 = vmatprep.subr.mxu0 0.0
        %923 = vmatpush1.msra.mxu0 0.0
        %924 = vmatprep.subr.mxu0 0.0
        %925 = vmatpush1.msra.mxu0 0.0
        %926 = vmatprep.subr.mxu0 0.0
        %927 = vmatpush1.msra.mxu0 0.0
        %928 = vmatprep.subr.mxu0 0.0
        %929 = vmatpush1.msra.mxu0 0.0
        %930 = vmatprep.subr.mxu0 0.0
        %931 = vmatpush1.msra.mxu0 0.0
        %932 = vmatprep.subr.mxu0 0.0
        %933 = vmatpush1.msra.mxu0 0.0
        %934 = vmatprep.subr.mxu0 0.0
        %935 = vmatpush1.msra.mxu0 0.0
        %936 = vmatprep.subr.mxu0 0.0
        %937 = vmatpush1.msra.mxu0 0.0
        %938 = vmatprep.subr.mxu0 0.0
        %939 = vmatpush1.msra.mxu0 0.0
        %940 = vmatprep.subr.mxu0 0.0
        %941 = vmatpush1.msra.mxu0 0.0
        %942 = vmatprep.mubr.f32.mxu0 0.0
        %943 = vmatmul.mubr.f32.gmra.mrb[0].mxu0 %v442
        %v944 = vpop.f32.mrb[0].mxu0
        %v945 = vadd.f32 0.0, %v944
        %v946 = vpop.f32.mrb[0].mxu0
        %947 = vmatprep.mubr.f32.mxu0 0.0
        %948 = vmatmul.mubr.f32.gmra.mrb[0].mxu0 %v445
        %v949 = vpop.f32.mrb[0].mxu0
        %v950 = vadd.f32 0.0, %v949
        %v951 = vpop.f32.mrb[0].mxu0
        %952 = vdwg.mxu0
        %953 = vmatprep.subr.mxu0 0.0
        %954 = vmatpush1.msra.mxu0 %v876
        %955 = vmatprep.subr.mxu0 0.0
        %956 = vmatpush1.msra.mxu0 %v877
        %957 = vmatprep.subr.mxu0 0.0
        %958 = vmatpush1.msra.mxu0 0.0
        %959 = vmatprep.subr.mxu0 0.0
        %960 = vmatpush1.msra.mxu0 0.0
        %961 = vmatprep.subr.mxu0 0.0
        %962 = vmatpush1.msra.mxu0 0.0
        %963 = vmatprep.subr.mxu0 0.0
        %964 = vmatpush1.msra.mxu0 0.0
        %965 = vmatprep.subr.mxu0 0.0
        %966 = vmatpush1.msra.mxu0 0.0
        %967 = vmatprep.subr.mxu0 0.0
        %968 = vmatpush1.msra.mxu0 0.0
        %969 = vmatprep.subr.mxu0 0.0
        %970 = vmatpush1.msra.mxu0 0.0
        %971 = vmatprep.subr.mxu0 0.0
        %972 = vmatpush1.msra.mxu0 0.0
        %973 = vmatprep.subr.mxu0 0.0
        %974 = vmatpush1.msra.mxu0 0.0
        %975 = vmatprep.subr.mxu0 0.0
        %976 = vmatpush1.msra.mxu0 0.0
        %977 = vmatprep.subr.mxu0 0.0
        %978 = vmatpush1.msra.mxu0 0.0
        %979 = vmatprep.subr.mxu0 0.0
        %980 = vmatpush1.msra.mxu0 0.0
        %981 = vmatprep.subr.mxu0 0.0
        %982 = vmatpush1.msra.mxu0 0.0
        %983 = vmatprep.subr.mxu0 0.0
        %984 = vmatpush1.msra.mxu0 0.0
        %985 = vmatprep.subr.mxu0 0.0
        %986 = vmatpush1.msra.mxu0 0.0
        %987 = vmatprep.subr.mxu0 0.0
        %988 = vmatpush1.msra.mxu0 0.0
        %989 = vmatprep.subr.mxu0 0.0
        %990 = vmatpush1.msra.mxu0 0.0
        %991 = vmatprep.subr.mxu0 0.0
        %992 = vmatpush1.msra.mxu0 0.0
        %993 = vmatprep.subr.mxu0 0.0
        %994 = vmatpush1.msra.mxu0 0.0
        %995 = vmatprep.subr.mxu0 0.0
        %996 = vmatpush1.msra.mxu0 0.0
        %997 = vmatprep.subr.mxu0 0.0
        %998 = vmatpush1.msra.mxu0 0.0
        %999 = vmatprep.subr.mxu0 0.0
        %1000 = vmatpush1.msra.mxu0 0.0
        %1001 = vmatprep.subr.mxu0 0.0
        %1002 = vmatpush1.msra.mxu0 0.0
        %1003 = vmatprep.subr.mxu0 0.0
        %1004 = vmatpush1.msra.mxu0 0.0
        %1005 = vmatprep.subr.mxu0 0.0
        %1006 = vmatpush1.msra.mxu0 0.0
        %1007 = vmatprep.subr.mxu0 0.0
        %1008 = vmatpush1.msra.mxu0 0.0
        %1009 = vmatprep.subr.mxu0 0.0
        %1010 = vmatpush1.msra.mxu0 0.0
        %1011 = vmatprep.subr.mxu0 0.0
        %1012 = vmatpush1.msra.mxu0 0.0
        %1013 = vmatprep.subr.mxu0 0.0
        %1014 = vmatpush1.msra.mxu0 0.0
        %1015 = vmatprep.subr.mxu0 0.0
        %1016 = vmatpush1.msra.mxu0 0.0
        %1017 = vmatprep.mubr.f32.mxu0 0.0
        %1018 = vmatmul.mubr.f32.gmra.mrb[0].mxu0 %v442
        %v1019 = vpop.f32.mrb[0].mxu0
        %v1020 = vadd.f32 0.0, %v1019
        %v1021 = vpop.f32.mrb[0].mxu0
        %1022 = vmatprep.mubr.f32.mxu0 0.0
        %1023 = vmatmul.mubr.f32.gmra.mrb[0].mxu0 %v445
        %v1024 = vpop.f32.mrb[0].mxu0
        %v1025 = vadd.f32 0.0, %v1024
        %v1026 = vpop.f32.mrb[0].mxu0
        %1027 = vdwg.mxu0
        %1028 = vmatprep.subr.mxu0 0.0
        %1029 = vmatpush1.msra.mxu0 %v382
        %1030 = vmatprep.subr.mxu0 0.0
        %1031 = vmatpush1.msra.mxu0 %v383
        %1032 = vmatprep.subr.mxu0 0.0
        %1033 = vmatpush1.msra.mxu0 %v384
        %1034 = vmatprep.subr.mxu0 0.0
        %1035 = vmatpush1.msra.mxu0 %v385
        %1036 = vmatprep.subr.mxu0 0.0
        %1037 = vmatpush1.msra.mxu0 %v386
        %1038 = vmatprep.subr.mxu0 0.0
        %1039 = vmatpush1.msra.mxu0 %v387
        %1040 = vmatprep.subr.mxu0 0.0
        %1041 = vmatpush1.msra.mxu0 %v388
        %1042 = vmatprep.subr.mxu0 0.0
        %1043 = vmatpush1.msra.mxu0 %v389
        %1044 = vmatprep.subr.mxu0 0.0
        %1045 = vmatpush1.msra.mxu0 %v390
        %1046 = vmatprep.subr.mxu0 0.0
        %1047 = vmatpush1.msra.mxu0 %v391
        %1048 = vmatprep.subr.mxu0 0.0
        %1049 = vmatpush1.msra.mxu0 %v392
        %1050 = vmatprep.subr.mxu0 0.0
        %1051 = vmatpush1.msra.mxu0 %v393
        %1052 = vmatprep.subr.mxu0 0.0
        %1053 = vmatpush1.msra.mxu0 %v394
        %1054 = vmatprep.subr.mxu0 0.0
        %1055 = vmatpush1.msra.mxu0 %v395
        %1056 = vmatprep.subr.mxu0 0.0
        %1057 = vmatpush1.msra.mxu0 %v396
        %1058 = vmatprep.subr.mxu0 0.0
        %1059 = vmatpush1.msra.mxu0 %v397
        %1060 = vmatprep.subr.mxu0 0.0
        %1061 = vmatpush1.msra.mxu0 0.0
        %1062 = vmatprep.subr.mxu0 0.0
        %1063 = vmatpush1.msra.mxu0 0.0
        %1064 = vmatprep.subr.mxu0 0.0
        %1065 = vmatpush1.msra.mxu0 0.0
        %1066 = vmatprep.subr.mxu0 0.0
        %1067 = vmatpush1.msra.mxu0 0.0
        %1068 = vmatprep.subr.mxu0 0.0
        %1069 = vmatpush1.msra.mxu0 0.0
        %1070 = vmatprep.subr.mxu0 0.0
        %1071 = vmatpush1.msra.mxu0 0.0
        %1072 = vmatprep.subr.mxu0 0.0
        %1073 = vmatpush1.msra.mxu0 0.0
        %1074 = vmatprep.subr.mxu0 0.0
        %1075 = vmatpush1.msra.mxu0 0.0
        %1076 = vmatprep.subr.mxu0 0.0
        %1077 = vmatpush1.msra.mxu0 0.0
        %1078 = vmatprep.subr.mxu0 0.0
        %1079 = vmatpush1.msra.mxu0 0.0
        %1080 = vmatprep.subr.mxu0 0.0
        %1081 = vmatpush1.msra.mxu0 0.0
        %1082 = vmatprep.subr.mxu0 0.0
        %1083 = vmatpush1.msra.mxu0 0.0
        %1084 = vmatprep.subr.mxu0 0.0
        %1085 = vmatpush1.msra.mxu0 0.0
        %1086 = vmatprep.subr.mxu0 0.0
        %1087 = vmatpush1.msra.mxu0 0.0
        %1088 = vmatprep.subr.mxu0 0.0
        %1089 = vmatpush1.msra.mxu0 0.0
        %1090 = vmatprep.subr.mxu0 0.0
        %1091 = vmatpush1.msra.mxu0 0.0
        %1092 = vmatprep.mubr.f32.mxu0 0.0
        %1093 = vmatmul.mubr.f32.gmra.mrb[0].mxu0 %v945
        %v1094 = vpop.f32.mrb[0].mxu0
        %v1095 = vadd.f32 0.0, %v1094
        %v1096 = vpop.f32.mrb[0].mxu0
        %1097 = vmatprep.mubr.f32.mxu0 0.0
        %1098 = vmatmul.mubr.f32.gmra.mrb[0].mxu0 %v950
        %v1099 = vpop.f32.mrb[0].mxu0
        %v1100 = vadd.f32 0.0, %v1099
        %v1101 = vpop.f32.mrb[0].mxu0
        %1102 = vmatprep.mubr.f32.mxu0 0.0
        %1103 = vmatmul.mubr.f32.gmra.mrb[0].mxu0 %v1020
        %v1104 = vpop.f32.mrb[0].mxu0
        %v1105 = vadd.f32 0.0, %v1104
        %v1106 = vpop.f32.mrb[0].mxu0
        %1107 = vmatprep.mubr.f32.mxu0 0.0
        %1108 = vmatmul.mubr.f32.gmra.mrb[0].mxu0 %v1025
        %v1109 = vpop.f32.mrb[0].mxu0
        %v1110 = vadd.f32 0.0, %v1109
        %v1111 = vpop.f32.mrb[0].mxu0
        %1112 = vdwg.mxu0
        %v1113 = vmul.f32 %v1095, %v398
        %v1114 = vmul.f32 %v1100, %v399
        %v1115 = vmul.f32 %v1105, %v398
        %v1116 = vmul.f32 %v1110, %v399
        %v1117 = vmul.f32 %v1113, %v368
        %v1118 = vmul.f32 %v1114, %v369
        %v1119 = vadd.f32 %v1117, %v1115
        %v1120 = vadd.f32 %v1118, %v1116
        %1121 = vst [vmem:[%s356] sm:$0xff] %v1119
        %1122 = vst [vmem:[%s356 + $0x8] sm:$0xff] %v1120
        %1123 = vst [vmem:[%s363] sm:$0xff] %v814
        %1124 = vst [vmem:[%s363 + $0x8] sm:$0xff] %v819
        %s1125 = sand.u32 %s154, 1
        %s1126 = scalar_lea.sflag [#allocation4], %s1125
        %s1127 = sand.u32 %s154, 1
        %s1128 = smul.addr %s1127, 16
        %s1129 = scalar_lea.vmem [#allocation11], %s1128
        %s1130 = sand.u32 %s180, 1
        %s1131 = scalar_lea.sflag [#allocation13], %s1130
        %s1132 = sand.u32 %s180, 1
        %s1133 = smul.addr %s1132, 16
        %s1134 = scalar_lea.vmem [#allocation12], %s1133
        // Predicated region
        $region61: #{tpu_custom_call.1} parent=39 // pred_check
          %p1135 = pneg %p164
        $region62: #{tpu_custom_call.1} parent=39 // pred_check_branch
          %1137 = sbr.rel (%p1135) target = $region64
        $region63: #{tpu_custom_call.1} parent=39 // pred_region
          %s1139 = ssub.s32 256, 256
          %1140 = vsyncadd %s1126, %s1139
          %s1141 = smul.addr %s31, 2
          %s1142 = smul.addr %s1141, 128
          %s1143 = scalar_lea.hbm %s5, %s1142
          %s1144 = sshll.u32 %s1129, 4
          %s1145 = int_to_ptr.vmem [resolvable:$true] %s1144
          %1150 = dma.vmem_to_hbm [thread:$0]  %s1145, 256, %s1143, %s1126, 128, 128, 8
        $region64: #{tpu_custom_call.1} parent=39 // pred_fallthru
          _
        // Predicated region
        $region65: #{tpu_custom_call.1} parent=39 // pred_check
          %p1151 = pneg %p190
        $region66: #{tpu_custom_call.1} parent=39 // pred_check_branch
          %1153 = sbr.rel (%p1151) target = $region68
        $region67: #{tpu_custom_call.1} parent=39 // pred_region
          %s1155 = ssub.s32 256, 256
          %1156 = vsyncadd %s1131, %s1155
          %s1157 = smul.addr %s31, 2
          %s1158 = smul.addr %s1157, 128
          %s1159 = scalar_lea.hbm %s6, %s1158
          %s1160 = sshll.u32 %s1134, 4
          %s1161 = int_to_ptr.vmem [resolvable:$true] %s1160
          %1166 = dma.vmem_to_hbm [thread:$0]  %s1161, 256, %s1159, %s1131, 128, 128, 8
        $region68: #{tpu_custom_call.1} parent=39 // pred_fallthru
          _
      $region40: #{tpu_custom_call.1} parent=5 // pred_fallthru
        _
      %p1167 = scmp.le.s32.totalorder 2, %s26
      // Predicated region
      $region69: #{tpu_custom_call.1} parent=5 // pred_check
        %p1168 = pneg %p1167
      $region70: #{tpu_custom_call.1} parent=5 // pred_check_branch
        %1170 = sbr.rel (%p1168) target = $region72
      $region71: #{tpu_custom_call.1} parent=5 // pred_region
        %s1171 = ssub.s32 %s26, 2
        // Predicated region
        $region73: #{tpu_custom_call.1} parent=71 // pred_check
          %p1172 = pneg %p170
        $region74: #{tpu_custom_call.1} parent=71 // pred_check_branch
          %1174 = sbr.rel (%p1172) target = $region76
        $region75: #{tpu_custom_call.1} parent=71 // pred_region
          %s1175 = sand.u32 %s155, 1
          %s1176 = scalar_lea.sflag [#allocation4], %s1175
          %s1177 = sand.u32 %s155, 1
          %s1178 = smul.addr %s1177, 16
          %s1179 = scalar_lea.vmem [#allocation11], %s1178
          %1180 = dma.done %s1176, 256
        $region76: #{tpu_custom_call.1} parent=71 // pred_fallthru
          _
        // Predicated region
        $region77: #{tpu_custom_call.1} parent=71 // pred_check
          %p1181 = pneg %p196
        $region78: #{tpu_custom_call.1} parent=71 // pred_check_branch
          %1183 = sbr.rel (%p1181) target = $region80
        $region79: #{tpu_custom_call.1} parent=71 // pred_region
          %s1184 = sand.u32 %s181, 1
          %s1185 = scalar_lea.sflag [#allocation13], %s1184
          %s1186 = sand.u32 %s181, 1
          %s1187 = smul.addr %s1186, 16
          %s1188 = scalar_lea.vmem [#allocation12], %s1187
          %1189 = dma.done %s1185, 256
        $region80: #{tpu_custom_call.1} parent=71 // pred_fallthru
          _
      $region72: #{tpu_custom_call.1} parent=5 // pred_fallthru
        _
    $region6: #{tpu_custom_call.1} parent=1 // loop_footer
      %s30 = sadd.s32 1, %s26
    $region7: #{tpu_custom_call.1} parent=1 // loop_footer_branch
      %25 = sbr.rel target = $region3
    $region8: #{tpu_custom_call.1} parent=1 // loop_exit
      _
    %1190 = vsyncpa [#allocation3], 1
    %s1191 = scalar_lea.sflag [#allocation3], 1
    %1192 = vsyncpa %s1191, 1
    %1193 = vsyncpa [#allocation6], 1
    %s1194 = scalar_lea.sflag [#allocation6], 1
    %1195 = vsyncpa %s1194, 1
    %1196 = vsyncpa [#allocation9], 1
    %1197 = vsyncpa [#allocation4], 1
    %s1198 = scalar_lea.sflag [#allocation4], 1
    %1199 = vsyncpa %s1198, 1
    %1200 = vsyncpa [#allocation13], 1
    %s1201 = scalar_lea.sflag [#allocation13], 1
    %1202 = vsyncpa %s1201, 1

</llo_original>
